<compile_context>
chip_gen: v7x
topology: tpu7x:2x2x1
jax: 0.10.0
libtpu: 0.0.40
codegen_flags: <defaults>
</compile_context>

<pallas_src>
import jax
import jax.numpy as jnp
from jax.experimental import pallas as pl
from jax.experimental.pallas import tpu as pltpu


def ff_kernel(x_ref,
              w_enc_ref, b_enc_ref,
              w1_ref, b1_ref,
              w2_ref, b2_ref,
              w3a_ref, w3b_ref, b3_ref,
              wp_ref, bp_ref,
              o_ref):
    bf16 = jnp.bfloat16
    x = x_ref[...]  # already bf16

    # encode + ReLU   (bf16 MXU, f32 accumulate)
    e = jnp.maximum(
        jnp.dot(x, w_enc_ref[...], preferred_element_type=jnp.float32)
        + b_enc_ref[...], 0.0)

    # hidden1 + ReLU
    h1 = jnp.maximum(
        jnp.dot(e.astype(bf16), w1_ref[...],
                preferred_element_type=jnp.float32)
        + b1_ref[...], 0.0)

    # hidden2 + ReLU
    h2 = jnp.maximum(
        jnp.dot(h1.astype(bf16), w2_ref[...],
                preferred_element_type=jnp.float32)
        + b2_ref[...], 0.0)

    # Dropout (eval mode => identity), then hidden3 on concat([h1, h2]):
    #   concat([h1, h2]) @ W3 == h1 @ W3[:128] + h2 @ W3[128:]
    # TODO(synk): training-mode dropout (pltpu.prng_* masking) not implemented;
    #             inference semantics (identity) are reproduced here.
    h3 = jnp.maximum(
        jnp.dot(h1.astype(bf16), w3a_ref[...],
                preferred_element_type=jnp.float32)
        + jnp.dot(h2.astype(bf16), w3b_ref[...],
                  preferred_element_type=jnp.float32)
        + b3_ref[...], 0.0)

    # pred (no activation).  wp/bp are zero-padded to 128 output lanes so this
    # store is an unmasked, lane-dense vst; wrapper slices the first 2 cols.
    o_ref[...] = (jnp.dot(h3.astype(bf16), wp_ref[...],
                          preferred_element_type=jnp.float32)
                  + bp_ref[...]).astype(o_ref.dtype)


def _round_up(n, m):
    return ((n + m - 1) // m) * m


def ff_model_pallas(x, params, *, tile_b=512):
    """params = (w_enc, b_enc, w1, b1, w2, b2, w3a, w3b, b3, wp_pad, bp_pad),
    weights bf16 [in,out], biases f32 [1,out]; wp/bp padded to 128 lanes."""
    B, in_feat = x.shape
    (w_enc, b_enc, w1, b1, w2, b2, w3a, w3b, b3, wp_pad, bp_pad) = params
    out_pad = wp_pad.shape[1]          # 128 (lane-dense)
    hid = w_enc.shape[1]               # 128
    h2d = w2.shape[1]                  # 64
    h3d = w3a.shape[1]                 # 16

    # Effective tile: big (MXU-filling, multiple of 8) but never larger than
    # the padded batch. Ragged B handled by zero padding, not tiny tiles.
    tile = min(tile_b, _round_up(B, 8))
    Bp = _round_up(B, tile)

    x_in = x.astype(jnp.bfloat16)
    if Bp != B:
        x_in = jnp.pad(x_in, ((0, Bp - B), (0, 0)))

    grid = (Bp // tile,)

    def full_spec(arr):
        nd = arr.ndim
        return pl.BlockSpec(arr.shape, lambda i, _nd=nd: (0,) * _nd)

    weight_args = (w_enc, b_enc, w1, b1, w2, b2, w3a, w3b, b3, wp_pad, bp_pad)

    flops = 2 * Bp * (in_feat * hid + hid * hid + hid * h2d
                      + hid * h3d + h2d * h3d + h3d * out_pad)
    bytes_accessed = (x_in.size * x_in.dtype.itemsize
                      + Bp * out_pad * 4
                      + sum(a.size * a.dtype.itemsize for a in weight_args))

    out = pl.pallas_call(
        ff_kernel,
        out_shape=jax.ShapeDtypeStruct((Bp, out_pad), jnp.float32),
        grid_spec=pltpu.PrefetchScalarGridSpec(
            num_scalar_prefetch=0,
            grid=grid,
            in_specs=[pl.BlockSpec((tile, in_feat), lambda i: (i, 0))]
                     + [full_spec(a) for a in weight_args],
            out_specs=pl.BlockSpec((tile, out_pad), lambda i: (i, 0)),
        ),
        compiler_params=pltpu.CompilerParams(
            dimension_semantics=("parallel",)),
        cost_estimate=pl.CostEstimate(flops=flops, transcendentals=0,
                                      bytes_accessed=bytes_accessed),
    )(x_in, *weight_args)

    return out[:B, :2]


def init_params(key, in_feat, hid_dim=128):
    """Deterministic init mimicking nn.Linear (uniform +-1/sqrt(fan_in)).
    Weights stored [in_dim, out_dim]; biases [1, out_dim]; all f32."""
    dims = [
        ("encode", in_feat, hid_dim),
        ("hidden1", hid_dim, hid_dim),
        ("hidden2", hid_dim, 64),
        ("hidden3", 64 + hid_dim, 16),
        ("pred", 16, 2),
    ]
    keys = jax.random.split(key, 2 * len(dims))
    params = {}
    for idx, (name, fan_in, fan_out) in enumerate(dims):
        bound = 1.0 / jnp.sqrt(jnp.float32(fan_in))
        w = jax.random.uniform(keys[2 * idx], (fan_in, fan_out),
                               jnp.float32, -bound, bound)
        b = jax.random.uniform(keys[2 * idx + 1], (1, fan_out),
                               jnp.float32, -bound, bound)
        params[name] = (w, b)
    return params


def pack_params(p, hid_dim=128, out_pad=128):
    """Cast weights to bf16, keep biases f32, split hidden3 for the
    concat-free formulation, and zero-pad pred to `out_pad` lanes."""
    bf16 = jnp.bfloat16
    w_enc, b_enc = p["encode"]
    w1, b1 = p["hidden1"]
    w2, b2 = p["hidden2"]
    w3, b3 = p["hidden3"]
    wp, bp = p["pred"]

    w3a, w3b = w3[:hid_dim, :], w3[hid_dim:, :]

    n_out = wp.shape[1]
    wp_pad = jnp.zeros((wp.shape[0], out_pad), jnp.float32).at[:, :n_out].set(wp)
    bp_pad = jnp.zeros((1, out_pad), jnp.float32).at[:, :n_out].set(bp)

    return (w_enc.astype(bf16), b_enc,
            w1.astype(bf16), b1,
            w2.astype(bf16), b2,
            w3a.astype(bf16), w3b.astype(bf16), b3,
            wp_pad.astype(bf16), bp_pad)


def ff_model_ref(x, p):
    """Pure-JAX f32 reference of the PyTorch forward (eval-mode dropout)."""
    relu = lambda v: jnp.maximum(v, 0.0)
    e = relu(x @ p["encode"][0] + p["encode"][1])
    h1 = relu(e @ p["hidden1"][0] + p["hidden1"][1])
    h2 = relu(h1 @ p["hidden2"][0] + p["hidden2"][1])
    d = jnp.concatenate([h1, h2], axis=-1)
    h3 = relu(d @ p["hidden3"][0] + p["hidden3"][1])
    return h3 @ p["pred"][0] + p["pred"][1]


if __name__ == "__main__":
    in_feat = 32
    hid_dim = 128

    key = jax.random.PRNGKey(0)
    k_param, k_x = jax.random.split(key)
    params_dict = init_params(k_param, in_feat, hid_dim)
    params = pack_params(params_dict, hid_dim)

    # Small aligned batch.
    x16 = jax.random.normal(k_x, (16, in_feat), jnp.float32)
    out16 = jax.block_until_ready(ff_model_pallas(x16, params))
    ref16 = ff_model_ref(x16, params_dict)
    assert out16.shape == (16, 2)
    # bf16 inputs / f32 accumulation => loosened tolerance vs. f32 reference.
    assert jnp.allclose(out16, ref16, atol=5e-2, rtol=5e-2), "mismatch (B=16)"

    # Ragged batch exercises the padding path (no tiny-tile fallback).
    x12 = x16[:12]
    out12 = jax.block_until_ready(ff_model_pallas(x12, params))
    assert out12.shape == (12, 2)
    assert jnp.allclose(out12, ref16[:12], atol=5e-2, rtol=5e-2), "mismatch (B=12)"

    print("KERNEL_OK")
</pallas_src>

<mosaic_0001>
module attributes {stable_mosaic.version = 11 : i64} {
  func.func @ff_kernel(%arg0: i32, %arg1: memref<16x32xbf16, #tpu.memory_space<vmem>>, %arg2: memref<32x128xbf16, #tpu.memory_space<vmem>>, %arg3: memref<1x128xf32, #tpu.memory_space<vmem>>, %arg4: memref<128x128xbf16, #tpu.memory_space<vmem>>, %arg5: memref<1x128xf32, #tpu.memory_space<vmem>>, %arg6: memref<128x64xbf16, #tpu.memory_space<vmem>>, %arg7: memref<1x64xf32, #tpu.memory_space<vmem>>, %arg8: memref<128x16xbf16, #tpu.memory_space<vmem>>, %arg9: memref<64x16xbf16, #tpu.memory_space<vmem>>, %arg10: memref<1x16xf32, #tpu.memory_space<vmem>>, %arg11: memref<16x128xbf16, #tpu.memory_space<vmem>>, %arg12: memref<1x128xf32, #tpu.memory_space<vmem>>, %arg13: memref<16x128xf32, #tpu.memory_space<vmem>>) attributes {dimension_semantics = [#tpu.dimension_semantics<parallel>], iteration_bounds = array<i64: 1>, scalar_prefetch = 0 : i64, scratch_operands = 0 : i64, tpu.core_type = #tpu.core_type<tc>, window_params = [{transform_indices = @transform_0, window_bounds = array<i64: 16, 32>}, {pipeline_mode = #tpu.pipeline_mode<synchronous>, transform_indices = @transform_1, window_bounds = array<i64: 32, 128>}, {pipeline_mode = #tpu.pipeline_mode<synchronous>, transform_indices = @transform_2, window_bounds = array<i64: 1, 128>}, {pipeline_mode = #tpu.pipeline_mode<synchronous>, transform_indices = @transform_3, window_bounds = array<i64: 128, 128>}, {pipeline_mode = #tpu.pipeline_mode<synchronous>, transform_indices = @transform_4, window_bounds = array<i64: 1, 128>}, {pipeline_mode = #tpu.pipeline_mode<synchronous>, transform_indices = @transform_5, window_bounds = array<i64: 128, 64>}, {pipeline_mode = #tpu.pipeline_mode<synchronous>, transform_indices = @transform_6, window_bounds = array<i64: 1, 64>}, {pipeline_mode = #tpu.pipeline_mode<synchronous>, transform_indices = @transform_7, window_bounds = array<i64: 128, 16>}, {pipeline_mode = #tpu.pipeline_mode<synchronous>, transform_indices = @transform_8, window_bounds = array<i64: 64, 16>}, {pipeline_mode = #tpu.pipeline_mode<synchronous>, transform_indices = @transform_9, window_bounds = array<i64: 1, 16>}, {pipeline_mode = #tpu.pipeline_mode<synchronous>, transform_indices = @transform_10, window_bounds = array<i64: 16, 128>}, {pipeline_mode = #tpu.pipeline_mode<synchronous>, transform_indices = @transform_11, window_bounds = array<i64: 1, 128>}, {transform_indices = @transform_12, window_bounds = array<i64: 16, 128>}]} {
    %c0 = arith.constant 0 : index
    %c0_0 = arith.constant 0 : index
    %0 = vector.load %arg1[%c0, %c0_0] : memref<16x32xbf16, #tpu.memory_space<vmem>>, vector<16x32xbf16>
    %c0_1 = arith.constant 0 : index
    %c0_2 = arith.constant 0 : index
    %1 = vector.load %arg2[%c0_1, %c0_2] : memref<32x128xbf16, #tpu.memory_space<vmem>>, vector<32x128xbf16>
    %cst = arith.constant dense<0.000000e+00> : vector<16x128xf32>
    %2 = tpu.matmul %0, %1, %cst {dimension_numbers = #tpu.dot_dimension_numbers<[1], [0], [0], [1], [0, 0, 1, 1], [], []>} : vector<16x32xbf16>, vector<32x128xbf16>, vector<16x128xf32> -> vector<16x128xf32>
    %c0_3 = arith.constant 0 : index
    %c0_4 = arith.constant 0 : index
    %3 = vector.load %arg3[%c0_3, %c0_4] : memref<1x128xf32, #tpu.memory_space<vmem>>, vector<1x128xf32>
    %4 = vector.broadcast %3 : vector<1x128xf32> to vector<16x128xf32>
    %5 = arith.addf %2, %4 : vector<16x128xf32>
    %cst_5 = arith.constant 0.000000e+00 : f32
    %6 = vector.broadcast %cst_5 : f32 to vector<16x128xf32>
    %7 = arith.maximumf %5, %6 : vector<16x128xf32>
    %8 = arith.truncf %7 : vector<16x128xf32> to vector<16x128xbf16>
    %c0_6 = arith.constant 0 : index
    %c0_7 = arith.constant 0 : index
    %9 = vector.load %arg4[%c0_6, %c0_7] : memref<128x128xbf16, #tpu.memory_space<vmem>>, vector<128x128xbf16>
    %cst_8 = arith.constant dense<0.000000e+00> : vector<16x128xf32>
    %10 = tpu.matmul %8, %9, %cst_8 {dimension_numbers = #tpu.dot_dimension_numbers<[1], [0], [0], [1], [0, 0, 1, 1], [], []>} : vector<16x128xbf16>, vector<128x128xbf16>, vector<16x128xf32> -> vector<16x128xf32>
    %c0_9 = arith.constant 0 : index
    %c0_10 = arith.constant 0 : index
    %11 = vector.load %arg5[%c0_9, %c0_10] : memref<1x128xf32, #tpu.memory_space<vmem>>, vector<1x128xf32>
    %12 = vector.broadcast %11 : vector<1x128xf32> to vector<16x128xf32>
    %13 = arith.addf %10, %12 : vector<16x128xf32>
    %cst_11 = arith.constant 0.000000e+00 : f32
    %14 = vector.broadcast %cst_11 : f32 to vector<16x128xf32>
    %15 = arith.maximumf %13, %14 : vector<16x128xf32>
    %16 = arith.truncf %15 : vector<16x128xf32> to vector<16x128xbf16>
    %c0_12 = arith.constant 0 : index
    %c0_13 = arith.constant 0 : index
    %17 = vector.load %arg6[%c0_12, %c0_13] : memref<128x64xbf16, #tpu.memory_space<vmem>>, vector<128x64xbf16>
    %cst_14 = arith.constant dense<0.000000e+00> : vector<16x64xf32>
    %18 = tpu.matmul %16, %17, %cst_14 {dimension_numbers = #tpu.dot_dimension_numbers<[1], [0], [0], [1], [0, 0, 1, 1], [], []>} : vector<16x128xbf16>, vector<128x64xbf16>, vector<16x64xf32> -> vector<16x64xf32>
    %c0_15 = arith.constant 0 : index
    %c0_16 = arith.constant 0 : index
    %19 = vector.load %arg7[%c0_15, %c0_16] : memref<1x64xf32, #tpu.memory_space<vmem>>, vector<1x64xf32>
    %20 = vector.broadcast %19 : vector<1x64xf32> to vector<16x64xf32>
    %21 = arith.addf %18, %20 : vector<16x64xf32>
    %cst_17 = arith.constant 0.000000e+00 : f32
    %22 = vector.broadcast %cst_17 : f32 to vector<16x64xf32>
    %23 = arith.maximumf %21, %22 : vector<16x64xf32>
    %24 = arith.truncf %15 : vector<16x128xf32> to vector<16x128xbf16>
    %c0_18 = arith.constant 0 : index
    %c0_19 = arith.constant 0 : index
    %25 = vector.load %arg8[%c0_18, %c0_19] : memref<128x16xbf16, #tpu.memory_space<vmem>>, vector<128x16xbf16>
    %cst_20 = arith.constant dense<0.000000e+00> : vector<16x16xf32>
    %26 = tpu.matmul %24, %25, %cst_20 {dimension_numbers = #tpu.dot_dimension_numbers<[1], [0], [0], [1], [0, 0, 1, 1], [], []>} : vector<16x128xbf16>, vector<128x16xbf16>, vector<16x16xf32> -> vector<16x16xf32>
    %27 = arith.truncf %23 : vector<16x64xf32> to vector<16x64xbf16>
    %c0_21 = arith.constant 0 : index
    %c0_22 = arith.constant 0 : index
    %28 = vector.load %arg9[%c0_21, %c0_22] : memref<64x16xbf16, #tpu.memory_space<vmem>>, vector<64x16xbf16>
    %cst_23 = arith.constant dense<0.000000e+00> : vector<16x16xf32>
    %29 = tpu.matmul %27, %28, %cst_23 {dimension_numbers = #tpu.dot_dimension_numbers<[1], [0], [0], [1], [0, 0, 1, 1], [], []>} : vector<16x64xbf16>, vector<64x16xbf16>, vector<16x16xf32> -> vector<16x16xf32>
    %30 = arith.addf %26, %29 : vector<16x16xf32>
    %c0_24 = arith.constant 0 : index
    %c0_25 = arith.constant 0 : index
    %31 = vector.load %arg10[%c0_24, %c0_25] : memref<1x16xf32, #tpu.memory_space<vmem>>, vector<1x16xf32>
    %32 = vector.broadcast %31 : vector<1x16xf32> to vector<16x16xf32>
    %33 = arith.addf %30, %32 : vector<16x16xf32>
    %cst_26 = arith.constant 0.000000e+00 : f32
    %34 = vector.broadcast %cst_26 : f32 to vector<16x16xf32>
    %35 = arith.maximumf %33, %34 : vector<16x16xf32>
    %36 = arith.truncf %35 : vector<16x16xf32> to vector<16x16xbf16>
    %c0_27 = arith.constant 0 : index
    %c0_28 = arith.constant 0 : index
    %37 = vector.load %arg11[%c0_27, %c0_28] : memref<16x128xbf16, #tpu.memory_space<vmem>>, vector<16x128xbf16>
    %cst_29 = arith.constant dense<0.000000e+00> : vector<16x128xf32>
    %38 = tpu.matmul %36, %37, %cst_29 {dimension_numbers = #tpu.dot_dimension_numbers<[1], [0], [0], [1], [0, 0, 1, 1], [], []>} : vector<16x16xbf16>, vector<16x128xbf16>, vector<16x128xf32> -> vector<16x128xf32>
    %c0_30 = arith.constant 0 : index
    %c0_31 = arith.constant 0 : index
    %39 = vector.load %arg12[%c0_30, %c0_31] : memref<1x128xf32, #tpu.memory_space<vmem>>, vector<1x128xf32>
    %40 = vector.broadcast %39 : vector<1x128xf32> to vector<16x128xf32>
    %41 = arith.addf %38, %40 : vector<16x128xf32>
    %c0_32 = arith.constant 0 : index
    %c0_33 = arith.constant 0 : index
    %42 = vector.load %arg13[%c0_32, %c0_33] : memref<16x128xf32, #tpu.memory_space<vmem>>, vector<16x128xf32>
    tpu.vector_store %arg13[%c0_32, %c0_33], %41 {strides = array<i32>} : memref<16x128xf32, #tpu.memory_space<vmem>>, vector<16x128xf32>,
    return
  }
  func.func @transform_0(%arg0: i32) -> (i32, i32) {
    %c0_i32 = arith.constant 0 : i32
    %c0_i32_0 = arith.constant 0 : i32
    return %arg0, %c0_i32 : i32, i32
  }
  func.func @transform_1(%arg0: i32) -> (i32, i32) {
    %c0_i32 = arith.constant 0 : i32
    %c0_i32_0 = arith.constant 0 : i32
    %c0_i32_1 = arith.constant 0 : i32
    return %c0_i32, %c0_i32_0 : i32, i32
  }
  func.func @transform_2(%arg0: i32) -> (i32, i32) {
    %c0_i32 = arith.constant 0 : i32
    %c0_i32_0 = arith.constant 0 : i32
    %c0_i32_1 = arith.constant 0 : i32
    return %c0_i32, %c0_i32_0 : i32, i32
  }
  func.func @transform_3(%arg0: i32) -> (i32, i32) {
    %c0_i32 = arith.constant 0 : i32
    %c0_i32_0 = arith.constant 0 : i32
    %c0_i32_1 = arith.constant 0 : i32
    return %c0_i32, %c0_i32_0 : i32, i32
  }
  func.func @transform_4(%arg0: i32) -> (i32, i32) {
    %c0_i32 = arith.constant 0 : i32
    %c0_i32_0 = arith.constant 0 : i32
    %c0_i32_1 = arith.constant 0 : i32
    return %c0_i32, %c0_i32_0 : i32, i32
  }
  func.func @transform_5(%arg0: i32) -> (i32, i32) {
    %c0_i32 = arith.constant 0 : i32
    %c0_i32_0 = arith.constant 0 : i32
    %c0_i32_1 = arith.constant 0 : i32
    return %c0_i32, %c0_i32_0 : i32, i32
  }
  func.func @transform_6(%arg0: i32) -> (i32, i32) {
    %c0_i32 = arith.constant 0 : i32
    %c0_i32_0 = arith.constant 0 : i32
    %c0_i32_1 = arith.constant 0 : i32
    return %c0_i32, %c0_i32_0 : i32, i32
  }
  func.func @transform_7(%arg0: i32) -> (i32, i32) {
    %c0_i32 = arith.constant 0 : i32
    %c0_i32_0 = arith.constant 0 : i32
    %c0_i32_1 = arith.constant 0 : i32
    return %c0_i32, %c0_i32_0 : i32, i32
  }
  func.func @transform_8(%arg0: i32) -> (i32, i32) {
    %c0_i32 = arith.constant 0 : i32
    %c0_i32_0 = arith.constant 0 : i32
    %c0_i32_1 = arith.constant 0 : i32
    return %c0_i32, %c0_i32_0 : i32, i32
  }
  func.func @transform_9(%arg0: i32) -> (i32, i32) {
    %c0_i32 = arith.constant 0 : i32
    %c0_i32_0 = arith.constant 0 : i32
    %c0_i32_1 = arith.constant 0 : i32
    return %c0_i32, %c0_i32_0 : i32, i32
  }
  func.func @transform_10(%arg0: i32) -> (i32, i32) {
    %c0_i32 = arith.constant 0 : i32
    %c0_i32_0 = arith.constant 0 : i32
    %c0_i32_1 = arith.constant 0 : i32
    return %c0_i32, %c0_i32_0 : i32, i32
  }
  func.func @transform_11(%arg0: i32) -> (i32, i32) {
    %c0_i32 = arith.constant 0 : i32
    %c0_i32_0 = arith.constant 0 : i32
    %c0_i32_1 = arith.constant 0 : i32
    return %c0_i32, %c0_i32_0 : i32, i32
  }
  func.func @transform_12(%arg0: i32) -> (i32, i32) {
    %c0_i32 = arith.constant 0 : i32
    %c0_i32_0 = arith.constant 0 : i32
    return %arg0, %c0_i32 : i32, i32
  }
}

</mosaic_0001>

<llo_original>
// kernel: tpu_custom_call.1
$region0: #{tpu_custom_call.1}
  #allocation0 [shape = 'u32[]', space=smem, size = 0x4, offset = 0x4, fixed_abs, tag = 'smem constant byte address 0x4 - core index']
  #allocation1 [shape = 'u32[144,128]{1,0:T(1,128)}', space=vmem, size = 0x12000, scoped, tag = 'internal scratch']
  %s0 = inlined_call_operand.vmem [shape: bf16[16,32], index: 0, kind: input, shape index: {}]
  %s1 = inlined_call_operand.vmem [shape: bf16[32,128], index: 1, kind: input, shape index: {}]
  %s2 = inlined_call_operand.vmem [shape: f32[1,128], index: 2, kind: input, shape index: {}]
  %s3 = inlined_call_operand.vmem [shape: bf16[128,128], index: 3, kind: input, shape index: {}]
  %s4 = inlined_call_operand.vmem [shape: f32[1,128], index: 4, kind: input, shape index: {}]
  %s5 = inlined_call_operand.vmem [shape: bf16[128,64], index: 5, kind: input, shape index: {}]
  %s6 = inlined_call_operand.vmem [shape: f32[1,64], index: 6, kind: input, shape index: {}]
  %s7 = inlined_call_operand.vmem [shape: bf16[128,16], index: 7, kind: input, shape index: {}]
  %s8 = inlined_call_operand.vmem [shape: bf16[64,16], index: 8, kind: input, shape index: {}]
  %s9 = inlined_call_operand.vmem [shape: f32[1,16], index: 9, kind: input, shape index: {}]
  %s10 = inlined_call_operand.vmem [shape: bf16[16,128], index: 10, kind: input, shape index: {}]
  %s11 = inlined_call_operand.vmem [shape: f32[1,128], index: 11, kind: input, shape index: {}]
  %s12 = inlined_call_operand.hbm [shape: f32[16,128], index: 12, kind: output, shape index: {}]
  %s13 = sld [smem:[#allocation0]]
  $region58: #{tpu_custom_call.1} parent=0
    _
  %s15 = ssub.s32 1, %s13
  %s16 = scalar_select 0, %s15, %s13
  $region1: #{tpu_custom_call.1} parent=0
    #allocation2 [shape = 'u8[8192]{0}', space=vmem, size = 0x2000, scoped, tag = 'output window, operand 0, single buffered']
    #allocation3 [shape = 's32[1]{0}', space=sflag, size = 0x4, scoped, tag = 'scoped memory for tpu_custom_call.1']
    %17 = vsyncpa [#allocation3], 0
    // Predicated region
    $region2: #{tpu_custom_call.1} parent=1 // pred_check
      _
    $region3: #{tpu_custom_call.1} parent=1 // pred_check_branch
      %19 = sbr.rel (0) target = $region5
    $region4: #{tpu_custom_call.1} parent=1 // pred_region
      _
    $region5: #{tpu_custom_call.1} parent=1 // pred_fallthru
      _
    // Predicated region
    $region6: #{tpu_custom_call.1} parent=1 // pred_check
      _
    $region7: #{tpu_custom_call.1} parent=1 // pred_check_branch
      %21 = sbr.rel (0) target = $region9
    $region8: #{tpu_custom_call.1} parent=1 // pred_region
      _
    $region9: #{tpu_custom_call.1} parent=1 // pred_fallthru
      _
    // Predicated region
    $region10: #{tpu_custom_call.1} parent=1 // pred_check
      _
    $region11: #{tpu_custom_call.1} parent=1 // pred_check_branch
      %23 = sbr.rel (0) target = $region13
    $region12: #{tpu_custom_call.1} parent=1 // pred_region
      _
    $region13: #{tpu_custom_call.1} parent=1 // pred_fallthru
      _
    // Predicated region
    $region14: #{tpu_custom_call.1} parent=1 // pred_check
      _
    $region15: #{tpu_custom_call.1} parent=1 // pred_check_branch
      %25 = sbr.rel (0) target = $region17
    $region16: #{tpu_custom_call.1} parent=1 // pred_region
      _
    $region17: #{tpu_custom_call.1} parent=1 // pred_fallthru
      _
    // Predicated region
    $region18: #{tpu_custom_call.1} parent=1 // pred_check
      _
    $region19: #{tpu_custom_call.1} parent=1 // pred_check_branch
      %27 = sbr.rel (0) target = $region21
    $region20: #{tpu_custom_call.1} parent=1 // pred_region
      _
    $region21: #{tpu_custom_call.1} parent=1 // pred_fallthru
      _
    // Predicated region
    $region22: #{tpu_custom_call.1} parent=1 // pred_check
      _
    $region23: #{tpu_custom_call.1} parent=1 // pred_check_branch
      %29 = sbr.rel (0) target = $region25
    $region24: #{tpu_custom_call.1} parent=1 // pred_region
      _
    $region25: #{tpu_custom_call.1} parent=1 // pred_fallthru
      _
    // Predicated region
    $region26: #{tpu_custom_call.1} parent=1 // pred_check
      _
    $region27: #{tpu_custom_call.1} parent=1 // pred_check_branch
      %31 = sbr.rel (0) target = $region29
    $region28: #{tpu_custom_call.1} parent=1 // pred_region
      _
    $region29: #{tpu_custom_call.1} parent=1 // pred_fallthru
      _
    // Predicated region
    $region30: #{tpu_custom_call.1} parent=1 // pred_check
      _
    $region31: #{tpu_custom_call.1} parent=1 // pred_check_branch
      %33 = sbr.rel (0) target = $region33
    $region32: #{tpu_custom_call.1} parent=1 // pred_region
      _
    $region33: #{tpu_custom_call.1} parent=1 // pred_fallthru
      _
    // Predicated region
    $region34: #{tpu_custom_call.1} parent=1 // pred_check
      _
    $region35: #{tpu_custom_call.1} parent=1 // pred_check_branch
      %35 = sbr.rel (0) target = $region37
    $region36: #{tpu_custom_call.1} parent=1 // pred_region
      _
    $region37: #{tpu_custom_call.1} parent=1 // pred_fallthru
      _
    // Predicated region
    $region38: #{tpu_custom_call.1} parent=1 // pred_check
      _
    $region39: #{tpu_custom_call.1} parent=1 // pred_check_branch
      %37 = sbr.rel (0) target = $region41
    $region40: #{tpu_custom_call.1} parent=1 // pred_region
      _
    $region41: #{tpu_custom_call.1} parent=1 // pred_fallthru
      _
    // Predicated region
    $region42: #{tpu_custom_call.1} parent=1 // pred_check
      _
    $region43: #{tpu_custom_call.1} parent=1 // pred_check_branch
      %39 = sbr.rel (0) target = $region45
    $region44: #{tpu_custom_call.1} parent=1 // pred_region
      _
    $region45: #{tpu_custom_call.1} parent=1 // pred_fallthru
      _
    // Predicated region
    $region46: #{tpu_custom_call.1} parent=1 // pred_check
      _
    $region47: #{tpu_custom_call.1} parent=1 // pred_check_branch
      %41 = sbr.rel (0) target = $region49
    $region48: #{tpu_custom_call.1} parent=1 // pred_region
      _
    $region49: #{tpu_custom_call.1} parent=1 // pred_fallthru
      _
    %v43 = vld [vmem:[%s0] sm:$0xf]
    %v44 = vld [vmem:[%s0 + $0x4] sm:$0xf]
    %v45 = vld [vmem:[%s1] sm:$0xf]
    %v46 = vld [vmem:[%s1 + $0x4] sm:$0xf]
    %v47 = vld [vmem:[%s1 + $0x8] sm:$0xf]
    %v48 = vld [vmem:[%s1 + $0xc] sm:$0xf]
    %v49 = vld [vmem:[%s2] sm:$0x1]
    %v51 = vlaneseq
    %v52 = vshrl.u32 %v51, 7
    %v53 = vsub.s32 0, %v52
    %v54 = vrot.slane %v49, %v53
    %v58 = vunpack.c.l.b16 %v43
    %v59 = vunpack.c.l.b16 %v44
    %v60 = vpack.c.b16 %v59, %v58
    %v65 = vunpack.c.l.b16 %v45
    %v66 = vunpack.c.l.b16 %v46
    %v67 = vunpack.c.l.b16 %v47
    %v68 = vunpack.c.l.b16 %v48
    %v69 = vpack.c.b16 %v66, %v65
    %v70 = vpack.c.b16 %v68, %v67
    %vm73 = vcmask 261120
    %v75 = vsel %vm73, %v60, 0
    %77 = vmatprep.subr.bf16.mxu0 0
    %78 = vmatpush1.bf16.msra.mxu0 %v69
    %79 = vmatprep.subr.bf16.mxu0 0
    %80 = vmatpush1.bf16.msra.mxu0 %v70
    %81 = vmatprep.subr.bf16.mxu0 0
    %82 = vmatpush1.bf16.msra.mxu0 0
    %83 = vmatprep.subr.bf16.mxu0 0
    %84 = vmatpush1.bf16.msra.mxu0 0
    %85 = vmatprep.subr.bf16.mxu0 0
    %86 = vmatpush1.bf16.msra.mxu0 0
    %87 = vmatprep.subr.bf16.mxu0 0
    %88 = vmatpush1.bf16.msra.mxu0 0
    %89 = vmatprep.subr.bf16.mxu0 0
    %90 = vmatpush1.bf16.msra.mxu0 0
    %91 = vmatprep.subr.bf16.mxu0 0
    %92 = vmatpush1.bf16.msra.mxu0 0
    %93 = vmatprep.subr.bf16.mxu0 0
    %94 = vmatpush1.bf16.msra.mxu0 0
    %95 = vmatprep.subr.bf16.mxu0 0
    %96 = vmatpush1.bf16.msra.mxu0 0
    %97 = vmatprep.subr.bf16.mxu0 0
    %98 = vmatpush1.bf16.msra.mxu0 0
    %99 = vmatprep.subr.bf16.mxu0 0
    %100 = vmatpush1.bf16.msra.mxu0 0
    %101 = vmatprep.subr.bf16.mxu0 0
    %102 = vmatpush1.bf16.msra.mxu0 0
    %103 = vmatprep.subr.bf16.mxu0 0
    %104 = vmatpush1.bf16.msra.mxu0 0
    %105 = vmatprep.subr.bf16.mxu0 0
    %106 = vmatpush1.bf16.msra.mxu0 0
    %107 = vmatprep.subr.bf16.mxu0 0
    %108 = vmatpush1.bf16.msra.mxu0 0
    %109 = vmatprep.mubr.bf16.mxu0 0
    %110 = vmatmul.mubr.bf16.gmra.mrb[0].mxu0 %v75
    %v111 = vpop.f32.mrb[0].mxu0
    %v112 = vadd.f32 %v54, %v111
    %v113 = vpop.f32.mrb[0].mxu0
    %v114 = vpop.f32.mrb[0].mxu0
    %v115 = vadd.f32 %v54, %v114
    %v116 = vpop.f32.mrb[0].mxu0
    %117 = vdwg.mxu0
    %v118 = vmax.f32 %v112, 0.0
    %v119 = vmax.f32 %v115, 0.0
    %v120 = vpack.c.bf16 %v119, %v118
    %v121 = vld [vmem:[%s3] sm:$0xf]
    %v122 = vld [vmem:[%s3 + $0x4] sm:$0xf]
    %v123 = vld [vmem:[%s3 + $0x8] sm:$0xf]
    %v124 = vld [vmem:[%s3 + $0xc] sm:$0xf]
    %v125 = vld [vmem:[%s3 + $0x10] sm:$0xf]
    %v126 = vld [vmem:[%s3 + $0x14] sm:$0xf]
    %v127 = vld [vmem:[%s3 + $0x18] sm:$0xf]
    %v128 = vld [vmem:[%s3 + $0x1c] sm:$0xf]
    %v129 = vld [vmem:[%s3 + $0x20] sm:$0xf]
    %v130 = vld [vmem:[%s3 + $0x24] sm:$0xf]
    %v131 = vld [vmem:[%s3 + $0x28] sm:$0xf]
    %v132 = vld [vmem:[%s3 + $0x2c] sm:$0xf]
    %v133 = vld [vmem:[%s3 + $0x30] sm:$0xf]
    %v134 = vld [vmem:[%s3 + $0x34] sm:$0xf]
    %v135 = vld [vmem:[%s3 + $0x38] sm:$0xf]
    %v136 = vld [vmem:[%s3 + $0x3c] sm:$0xf]
    %v137 = vld [vmem:[%s4] sm:$0x1]
    %v139 = vlaneseq
    %v140 = vshrl.u32 %v139, 7
    %v141 = vsub.s32 0, %v140
    %v142 = vrot.slane %v137, %v141
    %v160 = vunpack.c.l.b16 %v121
    %v161 = vunpack.c.l.b16 %v122
    %v162 = vunpack.c.l.b16 %v123
    %v163 = vunpack.c.l.b16 %v124
    %v164 = vunpack.c.l.b16 %v125
    %v165 = vunpack.c.l.b16 %v126
    %v166 = vunpack.c.l.b16 %v127
    %v167 = vunpack.c.l.b16 %v128
    %v168 = vunpack.c.l.b16 %v129
    %v169 = vunpack.c.l.b16 %v130
    %v170 = vunpack.c.l.b16 %v131
    %v171 = vunpack.c.l.b16 %v132
    %v172 = vunpack.c.l.b16 %v133
    %v173 = vunpack.c.l.b16 %v134
    %v174 = vunpack.c.l.b16 %v135
    %v175 = vunpack.c.l.b16 %v136
    %v176 = vpack.c.b16 %v161, %v160
    %v177 = vpack.c.b16 %v163, %v162
    %v178 = vpack.c.b16 %v165, %v164
    %v179 = vpack.c.b16 %v167, %v166
    %v180 = vpack.c.b16 %v169, %v168
    %v181 = vpack.c.b16 %v171, %v170
    %v182 = vpack.c.b16 %v173, %v172
    %v183 = vpack.c.b16 %v175, %v174
    %192 = vmatprep.subr.bf16.mxu0 0
    %193 = vmatpush1.bf16.msra.mxu0 %v176
    %194 = vmatprep.subr.bf16.mxu0 0
    %195 = vmatpush1.bf16.msra.mxu0 %v177
    %196 = vmatprep.subr.bf16.mxu0 0
    %197 = vmatpush1.bf16.msra.mxu0 %v178
    %198 = vmatprep.subr.bf16.mxu0 0
    %199 = vmatpush1.bf16.msra.mxu0 %v179
    %200 = vmatprep.subr.bf16.mxu0 0
    %201 = vmatpush1.bf16.msra.mxu0 %v180
    %202 = vmatprep.subr.bf16.mxu0 0
    %203 = vmatpush1.bf16.msra.mxu0 %v181
    %204 = vmatprep.subr.bf16.mxu0 0
    %205 = vmatpush1.bf16.msra.mxu0 %v182
    %206 = vmatprep.subr.bf16.mxu0 0
    %207 = vmatpush1.bf16.msra.mxu0 %v183
    %208 = vmatprep.subr.bf16.mxu0 0
    %209 = vmatpush1.bf16.msra.mxu0 0
    %210 = vmatprep.subr.bf16.mxu0 0
    %211 = vmatpush1.bf16.msra.mxu0 0
    %212 = vmatprep.subr.bf16.mxu0 0
    %213 = vmatpush1.bf16.msra.mxu0 0
    %214 = vmatprep.subr.bf16.mxu0 0
    %215 = vmatpush1.bf16.msra.mxu0 0
    %216 = vmatprep.subr.bf16.mxu0 0
    %217 = vmatpush1.bf16.msra.mxu0 0
    %218 = vmatprep.subr.bf16.mxu0 0
    %219 = vmatpush1.bf16.msra.mxu0 0
    %220 = vmatprep.subr.bf16.mxu0 0
    %221 = vmatpush1.bf16.msra.mxu0 0
    %222 = vmatprep.subr.bf16.mxu0 0
    %223 = vmatpush1.bf16.msra.mxu0 0
    %224 = vmatprep.mubr.bf16.mxu0 0
    %225 = vmatmul.mubr.bf16.gmra.mrb[0].mxu0 %v120
    %v226 = vpop.f32.mrb[0].mxu0
    %v227 = vadd.f32 %v142, %v226
    %v228 = vpop.f32.mrb[0].mxu0
    %v229 = vpop.f32.mrb[0].mxu0
    %v230 = vadd.f32 %v142, %v229
    %v231 = vpop.f32.mrb[0].mxu0
    %232 = vdwg.mxu0
    %v233 = vmax.f32 %v227, 0.0
    %v234 = vmax.f32 %v230, 0.0
    %v235 = vpack.c.bf16 %v234, %v233
    %v236 = vld [vmem:[%s5] sm:$0xf]
    %v237 = vld [vmem:[%s5 + $0x4] sm:$0xf]
    %v238 = vld [vmem:[%s5 + $0x8] sm:$0xf]
    %v239 = vld [vmem:[%s5 + $0xc] sm:$0xf]
    %v240 = vld [vmem:[%s5 + $0x10] sm:$0xf]
    %v241 = vld [vmem:[%s5 + $0x14] sm:$0xf]
    %v242 = vld [vmem:[%s5 + $0x18] sm:$0xf]
    %v243 = vld [vmem:[%s5 + $0x1c] sm:$0xf]
    %v244 = vld [vmem:[%s5 + $0x20] sm:$0xf]
    %v245 = vld [vmem:[%s5 + $0x24] sm:$0xf]
    %v246 = vld [vmem:[%s5 + $0x28] sm:$0xf]
    %v247 = vld [vmem:[%s5 + $0x2c] sm:$0xf]
    %v248 = vld [vmem:[%s5 + $0x30] sm:$0xf]
    %v249 = vld [vmem:[%s5 + $0x34] sm:$0xf]
    %v250 = vld [vmem:[%s5 + $0x38] sm:$0xf]
    %v251 = vld [vmem:[%s5 + $0x3c] sm:$0xf]
    %v252 = vld [vmem:[%s6] sm:$0x1]
    %v254 = vlaneseq
    %v255 = vshrl.u32 %v254, 7
    %v256 = vsub.s32 0, %v255
    %v257 = vrot.slane %v252, %v256
    %v275 = vunpack.c.l.b16 %v236
    %v276 = vunpack.c.l.b16 %v237
    %v277 = vunpack.c.l.b16 %v238
    %v278 = vunpack.c.l.b16 %v239
    %v279 = vunpack.c.l.b16 %v240
    %v280 = vunpack.c.l.b16 %v241
    %v281 = vunpack.c.l.b16 %v242
    %v282 = vunpack.c.l.b16 %v243
    %v283 = vunpack.c.l.b16 %v244
    %v284 = vunpack.c.l.b16 %v245
    %v285 = vunpack.c.l.b16 %v246
    %v286 = vunpack.c.l.b16 %v247
    %v287 = vunpack.c.l.b16 %v248
    %v288 = vunpack.c.l.b16 %v249
    %v289 = vunpack.c.l.b16 %v250
    %v290 = vunpack.c.l.b16 %v251
    %v291 = vpack.c.b16 %v276, %v275
    %v292 = vpack.c.b16 %v278, %v277
    %v293 = vpack.c.b16 %v280, %v279
    %v294 = vpack.c.b16 %v282, %v281
    %v295 = vpack.c.b16 %v284, %v283
    %v296 = vpack.c.b16 %v286, %v285
    %v297 = vpack.c.b16 %v288, %v287
    %v298 = vpack.c.b16 %v290, %v289
    %307 = vmatprep.subr.bf16.mxu0 0
    %308 = vmatpush1.bf16.msra.mxu0 %v291
    %309 = vmatprep.subr.bf16.mxu0 0
    %310 = vmatpush1.bf16.msra.mxu0 %v292
    %311 = vmatprep.subr.bf16.mxu0 0
    %312 = vmatpush1.bf16.msra.mxu0 %v293
    %313 = vmatprep.subr.bf16.mxu0 0
    %314 = vmatpush1.bf16.msra.mxu0 %v294
    %315 = vmatprep.subr.bf16.mxu0 0
    %316 = vmatpush1.bf16.msra.mxu0 %v295
    %317 = vmatprep.subr.bf16.mxu0 0
    %318 = vmatpush1.bf16.msra.mxu0 %v296
    %319 = vmatprep.subr.bf16.mxu0 0
    %320 = vmatpush1.bf16.msra.mxu0 %v297
    %321 = vmatprep.subr.bf16.mxu0 0
    %322 = vmatpush1.bf16.msra.mxu0 %v298
    %323 = vmatprep.subr.bf16.mxu0 0
    %324 = vmatpush1.bf16.msra.mxu0 0
    %325 = vmatprep.subr.bf16.mxu0 0
    %326 = vmatpush1.bf16.msra.mxu0 0
    %327 = vmatprep.subr.bf16.mxu0 0
    %328 = vmatpush1.bf16.msra.mxu0 0
    %329 = vmatprep.subr.bf16.mxu0 0
    %330 = vmatpush1.bf16.msra.mxu0 0
    %331 = vmatprep.subr.bf16.mxu0 0
    %332 = vmatpush1.bf16.msra.mxu0 0
    %333 = vmatprep.subr.bf16.mxu0 0
    %334 = vmatpush1.bf16.msra.mxu0 0
    %335 = vmatprep.subr.bf16.mxu0 0
    %336 = vmatpush1.bf16.msra.mxu0 0
    %337 = vmatprep.subr.bf16.mxu0 0
    %338 = vmatpush1.bf16.msra.mxu0 0
    %339 = vmatprep.mubr.bf16.mxu0 0
    %340 = vmatmul.mubr.bf16.gmra.mrb[0].mxu0 %v235
    %v341 = vpop.f32.mrb[0].mxu0
    %v342 = vadd.f32 %v257, %v341
    %v343 = vpop.f32.mrb[0].mxu0
    %v344 = vpop.f32.mrb[0].mxu0
    %v345 = vadd.f32 %v257, %v344
    %v346 = vpop.f32.mrb[0].mxu0
    %347 = vdwg.mxu0
    %v348 = vmax.f32 %v342, 0.0
    %v349 = vmax.f32 %v345, 0.0
    %v350 = vld [vmem:[%s7] sm:$0xf]
    %v351 = vld [vmem:[%s7 + $0x4] sm:$0xf]
    %v352 = vld [vmem:[%s7 + $0x8] sm:$0xf]
    %v353 = vld [vmem:[%s7 + $0xc] sm:$0xf]
    %v354 = vld [vmem:[%s7 + $0x10] sm:$0xf]
    %v355 = vld [vmem:[%s7 + $0x14] sm:$0xf]
    %v356 = vld [vmem:[%s7 + $0x18] sm:$0xf]
    %v357 = vld [vmem:[%s7 + $0x1c] sm:$0xf]
    %v358 = vld [vmem:[%s7 + $0x20] sm:$0xf]
    %v359 = vld [vmem:[%s7 + $0x24] sm:$0xf]
    %v360 = vld [vmem:[%s7 + $0x28] sm:$0xf]
    %v361 = vld [vmem:[%s7 + $0x2c] sm:$0xf]
    %v362 = vld [vmem:[%s7 + $0x30] sm:$0xf]
    %v363 = vld [vmem:[%s7 + $0x34] sm:$0xf]
    %v364 = vld [vmem:[%s7 + $0x38] sm:$0xf]
    %v365 = vld [vmem:[%s7 + $0x3c] sm:$0xf]
    %v366 = vpack.c.bf16 %v349, %v348
    %v367 = vld [vmem:[%s8] sm:$0xf]
    %v368 = vld [vmem:[%s8 + $0x4] sm:$0xf]
    %v369 = vld [vmem:[%s8 + $0x8] sm:$0xf]
    %v370 = vld [vmem:[%s8 + $0xc] sm:$0xf]
    %v371 = vld [vmem:[%s8 + $0x10] sm:$0xf]
    %v372 = vld [vmem:[%s8 + $0x14] sm:$0xf]
    %v373 = vld [vmem:[%s8 + $0x18] sm:$0xf]
    %v374 = vld [vmem:[%s8 + $0x1c] sm:$0xf]
    %v383 = vunpack.c.l.b16 %v367
    %v384 = vunpack.c.l.b16 %v368
    %v385 = vunpack.c.l.b16 %v369
    %v386 = vunpack.c.l.b16 %v370
    %v387 = vunpack.c.l.b16 %v371
    %v388 = vunpack.c.l.b16 %v372
    %v389 = vunpack.c.l.b16 %v373
    %v390 = vunpack.c.l.b16 %v374
    %v391 = vpack.c.b16 %v384, %v383
    %v392 = vpack.c.b16 %v386, %v385
    %v393 = vpack.c.b16 %v388, %v387
    %v394 = vpack.c.b16 %v390, %v389
    %vm399 = vcmask 523264
    %v401 = vsel %vm399, %v366, 0
    %403 = vmatprep.subr.bf16.mxu0 0
    %404 = vmatpush1.bf16.msra.mxu0 %v391
    %405 = vmatprep.subr.bf16.mxu0 0
    %406 = vmatpush1.bf16.msra.mxu0 %v392
    %407 = vmatprep.subr.bf16.mxu0 0
    %408 = vmatpush1.bf16.msra.mxu0 %v393
    %409 = vmatprep.subr.bf16.mxu0 0
    %410 = vmatpush1.bf16.msra.mxu0 %v394
    %411 = vmatprep.subr.bf16.mxu0 0
    %412 = vmatpush1.bf16.msra.mxu0 0
    %413 = vmatprep.subr.bf16.mxu0 0
    %414 = vmatpush1.bf16.msra.mxu0 0
    %415 = vmatprep.subr.bf16.mxu0 0
    %416 = vmatpush1.bf16.msra.mxu0 0
    %417 = vmatprep.subr.bf16.mxu0 0
    %418 = vmatpush1.bf16.msra.mxu0 0
    %419 = vmatprep.subr.bf16.mxu0 0
    %420 = vmatpush1.bf16.msra.mxu0 0
    %421 = vmatprep.subr.bf16.mxu0 0
    %422 = vmatpush1.bf16.msra.mxu0 0
    %423 = vmatprep.subr.bf16.mxu0 0
    %424 = vmatpush1.bf16.msra.mxu0 0
    %425 = vmatprep.subr.bf16.mxu0 0
    %426 = vmatpush1.bf16.msra.mxu0 0
    %427 = vmatprep.subr.bf16.mxu0 0
    %428 = vmatpush1.bf16.msra.mxu0 0
    %429 = vmatprep.subr.bf16.mxu0 0
    %430 = vmatpush1.bf16.msra.mxu0 0
    %431 = vmatprep.subr.bf16.mxu0 0
    %432 = vmatpush1.bf16.msra.mxu0 0
    %433 = vmatprep.subr.bf16.mxu0 0
    %434 = vmatpush1.bf16.msra.mxu0 0
    %435 = vmatprep.mubr.bf16.mxu0 0
    %436 = vmatmul.mubr.bf16.gmra.mrb[0].mxu0 %v401
    %v437 = vpop.f32.mrb[0].mxu0
    %v438 = vadd.f32 0.0, %v437
    %v439 = vpop.f32.mrb[0].mxu0
    %v440 = vpop.f32.mrb[0].mxu0
    %v441 = vadd.f32 0.0, %v440
    %v442 = vpop.f32.mrb[0].mxu0
    %443 = vdwg.mxu0
    %v460 = vunpack.c.l.b16 %v350
    %v461 = vunpack.c.l.b16 %v351
    %v462 = vunpack.c.l.b16 %v352
    %v463 = vunpack.c.l.b16 %v353
    %v464 = vunpack.c.l.b16 %v354
    %v465 = vunpack.c.l.b16 %v355
    %v466 = vunpack.c.l.b16 %v356
    %v467 = vunpack.c.l.b16 %v357
    %v468 = vunpack.c.l.b16 %v358
    %v469 = vunpack.c.l.b16 %v359
    %v470 = vunpack.c.l.b16 %v360
    %v471 = vunpack.c.l.b16 %v361
    %v472 = vunpack.c.l.b16 %v362
    %v473 = vunpack.c.l.b16 %v363
    %v474 = vunpack.c.l.b16 %v364
    %v475 = vunpack.c.l.b16 %v365
    %v476 = vpack.c.b16 %v461, %v460
    %v477 = vpack.c.b16 %v463, %v462
    %v478 = vpack.c.b16 %v465, %v464
    %v479 = vpack.c.b16 %v467, %v466
    %v480 = vpack.c.b16 %v469, %v468
    %v481 = vpack.c.b16 %v471, %v470
    %v482 = vpack.c.b16 %v473, %v472
    %v483 = vpack.c.b16 %v475, %v474
    %492 = vmatprep.subr.bf16.mxu0 0
    %493 = vmatpush1.bf16.msra.mxu0 %v476
    %494 = vmatprep.subr.bf16.mxu0 0
    %495 = vmatpush1.bf16.msra.mxu0 %v477
    %496 = vmatprep.subr.bf16.mxu0 0
    %497 = vmatpush1.bf16.msra.mxu0 %v478
    %498 = vmatprep.subr.bf16.mxu0 0
    %499 = vmatpush1.bf16.msra.mxu0 %v479
    %500 = vmatprep.subr.bf16.mxu0 0
    %501 = vmatpush1.bf16.msra.mxu0 %v480
    %502 = vmatprep.subr.bf16.mxu0 0
    %503 = vmatpush1.bf16.msra.mxu0 %v481
    %504 = vmatprep.subr.bf16.mxu0 0
    %505 = vmatpush1.bf16.msra.mxu0 %v482
    %506 = vmatprep.subr.bf16.mxu0 0
    %507 = vmatpush1.bf16.msra.mxu0 %v483
    %508 = vmatprep.subr.bf16.mxu0 0
    %509 = vmatpush1.bf16.msra.mxu0 0
    %510 = vmatprep.subr.bf16.mxu0 0
    %511 = vmatpush1.bf16.msra.mxu0 0
    %512 = vmatprep.subr.bf16.mxu0 0
    %513 = vmatpush1.bf16.msra.mxu0 0
    %514 = vmatprep.subr.bf16.mxu0 0
    %515 = vmatpush1.bf16.msra.mxu0 0
    %516 = vmatprep.subr.bf16.mxu0 0
    %517 = vmatpush1.bf16.msra.mxu0 0
    %518 = vmatprep.subr.bf16.mxu0 0
    %519 = vmatpush1.bf16.msra.mxu0 0
    %520 = vmatprep.subr.bf16.mxu0 0
    %521 = vmatpush1.bf16.msra.mxu0 0
    %522 = vmatprep.subr.bf16.mxu0 0
    %523 = vmatpush1.bf16.msra.mxu0 0
    %524 = vmatprep.mubr.bf16.mxu0 0
    %525 = vmatmul.mubr.bf16.gmra.mrb[0].mxu0 %v235
    %v526 = vpop.f32.mrb[0].mxu0
    %v527 = vadd.f32 %v438, %v526
    %v528 = vpop.f32.mrb[0].mxu0
    %v529 = vpop.f32.mrb[0].mxu0
    %v530 = vadd.f32 %v441, %v529
    %v531 = vpop.f32.mrb[0].mxu0
    %532 = vdwg.mxu0
    %v533 = vld [vmem:[%s9] sm:$0x1]
    %v535 = vlaneseq
    %v536 = vshrl.u32 %v535, 7
    %v537 = vsub.s32 0, %v536
    %v538 = vrot.slane %v533, %v537
    %v540 = vadd.f32 %v527, %v538
    %v541 = vadd.f32 %v530, %v538
    %v542 = vmax.f32 %v540, 0.0
    %v543 = vmax.f32 %v541, 0.0
    %v544 = vpack.c.bf16 %v543, %v542
    %v545 = vld [vmem:[%s10] sm:$0xf]
    %v546 = vld [vmem:[%s10 + $0x4] sm:$0xf]
    %v547 = vld [vmem:[%s11] sm:$0x1]
    %v549 = vlaneseq
    %v550 = vshrl.u32 %v549, 7
    %v551 = vsub.s32 0, %v550
    %v552 = vrot.slane %v547, %v551
    %v556 = vunpack.c.l.b16 %v545
    %v557 = vunpack.c.l.b16 %v546
    %v558 = vpack.c.b16 %v557, %v556
    %vm560 = vcmask 130048
    %v562 = vsel %vm560, %v544, 0
    %564 = vmatprep.subr.bf16.mxu0 0
    %565 = vmatpush1.bf16.msra.mxu0 %v558
    %566 = vmatprep.subr.bf16.mxu0 0
    %567 = vmatpush1.bf16.msra.mxu0 0
    %568 = vmatprep.subr.bf16.mxu0 0
    %569 = vmatpush1.bf16.msra.mxu0 0
    %570 = vmatprep.subr.bf16.mxu0 0
    %571 = vmatpush1.bf16.msra.mxu0 0
    %572 = vmatprep.subr.bf16.mxu0 0
    %573 = vmatpush1.bf16.msra.mxu0 0
    %574 = vmatprep.subr.bf16.mxu0 0
    %575 = vmatpush1.bf16.msra.mxu0 0
    %576 = vmatprep.subr.bf16.mxu0 0
    %577 = vmatpush1.bf16.msra.mxu0 0
    %578 = vmatprep.subr.bf16.mxu0 0
    %579 = vmatpush1.bf16.msra.mxu0 0
    %580 = vmatprep.subr.bf16.mxu0 0
    %581 = vmatpush1.bf16.msra.mxu0 0
    %582 = vmatprep.subr.bf16.mxu0 0
    %583 = vmatpush1.bf16.msra.mxu0 0
    %584 = vmatprep.subr.bf16.mxu0 0
    %585 = vmatpush1.bf16.msra.mxu0 0
    %586 = vmatprep.subr.bf16.mxu0 0
    %587 = vmatpush1.bf16.msra.mxu0 0
    %588 = vmatprep.subr.bf16.mxu0 0
    %589 = vmatpush1.bf16.msra.mxu0 0
    %590 = vmatprep.subr.bf16.mxu0 0
    %591 = vmatpush1.bf16.msra.mxu0 0
    %592 = vmatprep.subr.bf16.mxu0 0
    %593 = vmatpush1.bf16.msra.mxu0 0
    %594 = vmatprep.subr.bf16.mxu0 0
    %595 = vmatpush1.bf16.msra.mxu0 0
    %596 = vmatprep.mubr.bf16.mxu0 0
    %597 = vmatmul.mubr.bf16.gmra.mrb[0].mxu0 %v562
    %v598 = vpop.f32.mrb[0].mxu0
    %v599 = vadd.f32 %v552, %v598
    %v600 = vpop.f32.mrb[0].mxu0
    %v601 = vpop.f32.mrb[0].mxu0
    %v602 = vadd.f32 %v552, %v601
    %v603 = vpop.f32.mrb[0].mxu0
    %604 = vdwg.mxu0
    %605 = vst [vmem:[#allocation2] sm:$0xff] %v599
    %606 = vst [vmem:[#allocation2 + $0x8] sm:$0xff] %v602
    // Predicated region
    $region50: #{tpu_custom_call.1} parent=1 // pred_check
      _
    $region51: #{tpu_custom_call.1} parent=1 // pred_check_branch
      %608 = sbr.rel (0) target = $region53
    $region52: #{tpu_custom_call.1} parent=1 // pred_region
      %s610 = ssub.s32 256, 256
      %611 = vsyncadd [#allocation3], %s610
      %s612 = sshll.u32 [#allocation2], 4
      %s613 = int_to_ptr.vmem [resolvable:$true] %s612
      %618 = dma.vmem_to_hbm [thread:$0]  %s613, 256, %s12, [#allocation3], 128, 128, 8
    $region53: #{tpu_custom_call.1} parent=1 // pred_fallthru
      _
    // Predicated region
    $region54: #{tpu_custom_call.1} parent=1 // pred_check
      _
    $region55: #{tpu_custom_call.1} parent=1 // pred_check_branch
      %620 = sbr.rel (0) target = $region57
    $region56: #{tpu_custom_call.1} parent=1 // pred_region
      %621 = dma.done [#allocation3], 256
    $region57: #{tpu_custom_call.1} parent=1 // pred_fallthru
      _
    %622 = vsyncpa [#allocation3], 1

</llo_original>
